<compile_context>
chip_gen: v7x
topology: tpu7x:2x2x1
jax: 0.10.0
libtpu: 0.0.40
codegen_flags: <defaults>
</compile_context>

<pallas_src>
import functools
import math

import jax
import jax.numpy as jnp
from jax import lax
from jax.experimental import pallas as pl
from jax.experimental.pallas import tpu as pltpu

FDIM = 32        # hidden width 30, zero-padded to a sublane multiple
CHUNK_MAX = 512  # points per inner chunk (lane axis) -- vreg-pressure limit
N_LAYERS = 6


def _round_up(v, m):
    return ((v + m - 1) // m) * m


def _tile_plan(n):
    """Pick (block, chunk, n_chunks, n_pad) for an N-point problem.

    block  = lane width per grid step (multiple of 128, <= 1024)
    chunk  = lane width per inner-loop chunk (<= 512)
    Prefers >= 2 grid steps whenever n >= 256 so both v7x TensorCores work.
    """
    n128 = _round_up(max(n, 1), 128)
    block = 128
    for cand in (1024, 512, 256):
        if cand * 2 <= n128:          # guarantees at least 2 grid steps
            block = cand
            break
    chunk = min(CHUNK_MAX, block)
    n_chunks = block // chunk
    n_pad = _round_up(n128, block)
    return block, chunk, n_chunks, n_pad


def _mlp_kernel(x_ref, wp_ref, bp_ref, o_ref, *, chunk, n_chunks):
    """Forward pass for one (2, block) feature-major slab of points.

    Walks `n_chunks` independent chunks of `chunk` points with an unrolled
    fori_loop so per-grid-step fixed cost is amortized.
    """
    # Hoist all weights / biases out of the chunk loop (one VMEM load per step).
    w1 = wp_ref[0]                      # (32, 32) zero-padded, only cols 0:2 used
    w1c0 = w1[:, 0:1]                   # (32, 1)
    w1c1 = w1[:, 1:2]                   # (32, 1)
    b1 = bp_ref[0]                      # (32, 1)
    ws = [wp_ref[l] for l in range(1, 5)]
    bs = [bp_ref[l] for l in range(1, 5)]
    w6 = wp_ref[5][:2, :]               # (2, 32)
    b6 = bp_ref[5][:2, :]               # (2, 1)

    def chunk_body(c, carry):
        off = pl.multiple_of(c * chunk, chunk)
        x = x_ref[:, pl.ds(off, chunk)].astype(jnp.float32)   # (2, chunk)

        # Layer 1 (in=2): broadcast multiply-adds on the VPU, skip the MXU.
        h = jnp.tanh(w1c0 * x[0:1, :] + w1c1 * x[1:2, :] + b1)  # (32, chunk)

        # Hidden layers 2..5: 32x32 MXU matmuls, lane-dense over points.
        for l in range(4):
            h = jnp.tanh(
                jnp.dot(ws[l], h, preferred_element_type=jnp.float32) + bs[l])

        # Output layer (2 rows), no activation. Lane-dense store.
        o_ref[:, pl.ds(off, chunk)] = (
            jnp.dot(w6, h, preferred_element_type=jnp.float32) + b6
        ).astype(o_ref.dtype)
        return carry

    lax.fori_loop(0, n_chunks, chunk_body, 0, unroll=True)


@jax.jit
def multiclass_forward_fm(xt, wp, bp):
    """Feature-major forward: xt (2, N) -> (2, N). Avoids transposes entirely."""
    n = xt.shape[1]
    block, chunk, n_chunks, n_pad = _tile_plan(n)

    xp = xt.astype(jnp.float32)
    if n_pad != n:
        xp = jnp.pad(xp, ((0, 0), (0, n_pad - n)))

    cost = pl.CostEstimate(
        flops=int(n_pad) * 2 * FDIM * FDIM * N_LAYERS,
        transcendentals=int(n_pad) * FDIM * (N_LAYERS - 1),
        bytes_accessed=int(n_pad) * (2 + 2) * 4 + int(wp.size + bp.size) * 4,
    )

    out = pl.pallas_call(
        functools.partial(_mlp_kernel, chunk=chunk, n_chunks=n_chunks),
        out_shape=jax.ShapeDtypeStruct((2, n_pad), jnp.float32),
        grid_spec=pltpu.PrefetchScalarGridSpec(
            num_scalar_prefetch=0,
            grid=(n_pad // block,),
            in_specs=[
                pl.BlockSpec((2, block), lambda i: (0, i)),        # x slab
                pl.BlockSpec(wp.shape, lambda i: (0, 0, 0)),       # packed W (resident)
                pl.BlockSpec(bp.shape, lambda i: (0, 0, 0)),       # packed b (resident)
            ],
            out_specs=pl.BlockSpec((2, block), lambda i: (0, i)),
        ),
        compiler_params=pltpu.CompilerParams(
            dimension_semantics=("parallel",)),
        cost_estimate=cost,
    )(xp, wp, bp)

    if n_pad != n:
        out = out[:, :n]
    return out


@jax.jit
def multiclass_forward(x, wp, bp):
    """Module-compatible forward: x (N, 2) -> (N, 2).

    The transpose/pad/slice/transpose plumbing lives inside one jit so XLA
    fuses it with the pallas custom call's operand/result copies.
    """
    return multiclass_forward_fm(x.T, wp, bp).T


def init_params(key):
    """nn.Linear-style init; weights in native PyTorch (out, in) layout."""
    sizes = [(2, 30), (30, 30), (30, 30), (30, 30), (30, 30), (30, 2)]
    params = []
    for (fan_in, fan_out) in sizes:
        key, kw, kb = jax.random.split(key, 3)
        bound = 1.0 / math.sqrt(fan_in)
        w = jax.random.uniform(kw, (fan_out, fan_in), jnp.float32, -bound, bound)
        b = jax.random.uniform(kb, (fan_out,), jnp.float32, -bound, bound)
        params.append((w, b))
    return params


def pack_params(params):
    """Zero-pad all layer weights/biases into one (L,32,32) + (L,32,1) slab."""
    n_layers = len(params)
    wp = jnp.zeros((n_layers, FDIM, FDIM), jnp.float32)
    bp = jnp.zeros((n_layers, FDIM, 1), jnp.float32)
    for l, (w, b) in enumerate(params):
        o, i = w.shape
        wp = wp.at[l, :o, :i].set(w.astype(jnp.float32))
        bp = bp.at[l, :o, 0].set(b.astype(jnp.float32))
    return wp, bp


def reference_forward(x, params):
    h = x.astype(jnp.float32)
    for i, (w, b) in enumerate(params):
        h = h @ w.T + b
        if i < len(params) - 1:
            h = jnp.tanh(h)
    return h


if __name__ == "__main__":
    key = jax.random.PRNGKey(0)
    k_p, k1, k2, k3 = jax.random.split(key, 4)

    params = init_params(k_p)
    wp, bp = pack_params(params)

    # Collocation-set sizes from the original script: boundary points (~200)
    # and interior_test (ni=2000), plus a tiny single-tile case (grid=1).
    for n, kk in ((100, k3), (200, k1), (2000, k2)):
        x = jax.random.uniform(kk, (n, 2), jnp.float32)

        out = jax.block_until_ready(multiclass_forward(x, wp, bp))
        ref = reference_forward(x, params)
        assert out.shape == (n, 2)
        assert jnp.allclose(out, ref, atol=1e-4, rtol=1e-4), \
            f"mismatch vs reference (n={n})"

        # Feature-major fast path (no transposes) must agree too.
        out_fm = jax.block_until_ready(multiclass_forward_fm(x.T, wp, bp))
        assert out_fm.shape == (2, n)
        assert jnp.allclose(out_fm.T, ref, atol=1e-4, rtol=1e-4), \
            f"feature-major mismatch vs reference (n={n})"

    print("KERNEL_OK")
</pallas_src>

<mosaic_0001>
module attributes {stable_mosaic.version = 11 : i64} {
  func.func @_mlp_kernel(%arg0: i32, %arg1: memref<2x128xf32, #tpu.memory_space<vmem>>, %arg2: memref<6x32x32xf32, #tpu.memory_space<vmem>>, %arg3: memref<6x32x1xf32, #tpu.memory_space<vmem>>, %arg4: memref<2x128xf32, #tpu.memory_space<vmem>>) attributes {dimension_semantics = [#tpu.dimension_semantics<parallel>], iteration_bounds = array<i64: 1>, scalar_prefetch = 0 : i64, scratch_operands = 0 : i64, tpu.core_type = #tpu.core_type<tc>, window_params = [{transform_indices = @transform_0, window_bounds = array<i64: 2, 128>}, {pipeline_mode = #tpu.pipeline_mode<synchronous>, transform_indices = @transform_1, window_bounds = array<i64: 6, 32, 32>}, {pipeline_mode = #tpu.pipeline_mode<synchronous>, transform_indices = @transform_2, window_bounds = array<i64: 6, 32, 1>}, {transform_indices = @transform_3, window_bounds = array<i64: 2, 128>}]} {
    %c0 = arith.constant 0 : index
    %c0_0 = arith.constant 0 : index
    %c0_1 = arith.constant 0 : index
    %0 = vector.load %arg2[%c0, %c0_0, %c0_1] : memref<6x32x32xf32, #tpu.memory_space<vmem>>, vector<1x32x32xf32>
    %1 = vector.shape_cast %0 : vector<1x32x32xf32> to vector<32x32xf32>
    %2 = vector.extract_strided_slice %1 {offsets = [0, 0], sizes = [32, 1], strides = [1, 1]} : vector<32x32xf32> to vector<32x1xf32>
    %3 = vector.extract_strided_slice %1 {offsets = [0, 1], sizes = [32, 1], strides = [1, 1]} : vector<32x32xf32> to vector<32x1xf32>
    %c0_2 = arith.constant 0 : index
    %c0_3 = arith.constant 0 : index
    %c0_4 = arith.constant 0 : index
    %4 = vector.load %arg3[%c0_2, %c0_3, %c0_4] : memref<6x32x1xf32, #tpu.memory_space<vmem>>, vector<1x32x1xf32>
    %5 = vector.shape_cast %4 : vector<1x32x1xf32> to vector<32x1xf32>
    %c1 = arith.constant 1 : index
    %c0_5 = arith.constant 0 : index
    %c0_6 = arith.constant 0 : index
    %6 = vector.load %arg2[%c1, %c0_5, %c0_6] : memref<6x32x32xf32, #tpu.memory_space<vmem>>, vector<1x32x32xf32>
    %7 = vector.shape_cast %6 : vector<1x32x32xf32> to vector<32x32xf32>
    %c2 = arith.constant 2 : index
    %c0_7 = arith.constant 0 : index
    %c0_8 = arith.constant 0 : index
    %8 = vector.load %arg2[%c2, %c0_7, %c0_8] : memref<6x32x32xf32, #tpu.memory_space<vmem>>, vector<1x32x32xf32>
    %9 = vector.shape_cast %8 : vector<1x32x32xf32> to vector<32x32xf32>
    %c3 = arith.constant 3 : index
    %c0_9 = arith.constant 0 : index
    %c0_10 = arith.constant 0 : index
    %10 = vector.load %arg2[%c3, %c0_9, %c0_10] : memref<6x32x32xf32, #tpu.memory_space<vmem>>, vector<1x32x32xf32>
    %11 = vector.shape_cast %10 : vector<1x32x32xf32> to vector<32x32xf32>
    %c4 = arith.constant 4 : index
    %c0_11 = arith.constant 0 : index
    %c0_12 = arith.constant 0 : index
    %12 = vector.load %arg2[%c4, %c0_11, %c0_12] : memref<6x32x32xf32, #tpu.memory_space<vmem>>, vector<1x32x32xf32>
    %13 = vector.shape_cast %12 : vector<1x32x32xf32> to vector<32x32xf32>
    %c1_13 = arith.constant 1 : index
    %c0_14 = arith.constant 0 : index
    %c0_15 = arith.constant 0 : index
    %14 = vector.load %arg3[%c1_13, %c0_14, %c0_15] : memref<6x32x1xf32, #tpu.memory_space<vmem>>, vector<1x32x1xf32>
    %15 = vector.shape_cast %14 : vector<1x32x1xf32> to vector<32x1xf32>
    %c2_16 = arith.constant 2 : index
    %c0_17 = arith.constant 0 : index
    %c0_18 = arith.constant 0 : index
    %16 = vector.load %arg3[%c2_16, %c0_17, %c0_18] : memref<6x32x1xf32, #tpu.memory_space<vmem>>, vector<1x32x1xf32>
    %17 = vector.shape_cast %16 : vector<1x32x1xf32> to vector<32x1xf32>
    %c3_19 = arith.constant 3 : index
    %c0_20 = arith.constant 0 : index
    %c0_21 = arith.constant 0 : index
    %18 = vector.load %arg3[%c3_19, %c0_20, %c0_21] : memref<6x32x1xf32, #tpu.memory_space<vmem>>, vector<1x32x1xf32>
    %19 = vector.shape_cast %18 : vector<1x32x1xf32> to vector<32x1xf32>
    %c4_22 = arith.constant 4 : index
    %c0_23 = arith.constant 0 : index
    %c0_24 = arith.constant 0 : index
    %20 = vector.load %arg3[%c4_22, %c0_23, %c0_24] : memref<6x32x1xf32, #tpu.memory_space<vmem>>, vector<1x32x1xf32>
    %21 = vector.shape_cast %20 : vector<1x32x1xf32> to vector<32x1xf32>
    %c5 = arith.constant 5 : index
    %c0_25 = arith.constant 0 : index
    %c0_26 = arith.constant 0 : index
    %22 = vector.load %arg2[%c5, %c0_25, %c0_26] : memref<6x32x32xf32, #tpu.memory_space<vmem>>, vector<1x32x32xf32>
    %23 = vector.shape_cast %22 : vector<1x32x32xf32> to vector<32x32xf32>
    %24 = vector.extract_strided_slice %23 {offsets = [0, 0], sizes = [2, 32], strides = [1, 1]} : vector<32x32xf32> to vector<2x32xf32>
    %c5_27 = arith.constant 5 : index
    %c0_28 = arith.constant 0 : index
    %c0_29 = arith.constant 0 : index
    %25 = vector.load %arg3[%c5_27, %c0_28, %c0_29] : memref<6x32x1xf32, #tpu.memory_space<vmem>>, vector<1x32x1xf32>
    %26 = vector.shape_cast %25 : vector<1x32x1xf32> to vector<32x1xf32>
    %27 = vector.extract_strided_slice %26 {offsets = [0, 0], sizes = [2, 1], strides = [1, 1]} : vector<32x1xf32> to vector<2x1xf32>
    %c0_i32 = arith.constant 0 : i32
    %c128_i32 = arith.constant 128 : i32
    %28 = arith.muli %c0_i32, %c128_i32 : i32
    %29 = tpu.assume_multiple %28, 128 : i32
    %c0_30 = arith.constant 0 : index
    %30 = arith.index_cast %29 : i32 to index
    %31 = vector.load %arg1[%c0_30, %30] : memref<2x128xf32, #tpu.memory_space<vmem>>, vector<2x128xf32>
    %32 = vector.extract_strided_slice %31 {offsets = [0, 0], sizes = [1, 128], strides = [1, 1]} : vector<2x128xf32> to vector<1x128xf32>
    %33 = vector.broadcast %2 : vector<32x1xf32> to vector<32x128xf32>
    %34 = vector.broadcast %32 : vector<1x128xf32> to vector<32x128xf32>
    %35 = arith.mulf %33, %34 : vector<32x128xf32>
    %36 = vector.extract_strided_slice %31 {offsets = [1, 0], sizes = [1, 128], strides = [1, 1]} : vector<2x128xf32> to vector<1x128xf32>
    %37 = vector.broadcast %3 : vector<32x1xf32> to vector<32x128xf32>
    %38 = vector.broadcast %36 : vector<1x128xf32> to vector<32x128xf32>
    %39 = arith.mulf %37, %38 : vector<32x128xf32>
    %40 = arith.addf %35, %39 : vector<32x128xf32>
    %41 = vector.broadcast %5 : vector<32x1xf32> to vector<32x128xf32>
    %42 = arith.addf %40, %41 : vector<32x128xf32>
    %43 = math.tanh %42 : vector<32x128xf32>
    %cst = arith.constant dense<0.000000e+00> : vector<32x128xf32>
    %44 = tpu.matmul %7, %43, %cst {dimension_numbers = #tpu.dot_dimension_numbers<[1], [0], [0], [1], [0, 0, 1, 1], [], []>} : vector<32x32xf32>, vector<32x128xf32>, vector<32x128xf32> -> vector<32x128xf32>
    %45 = vector.broadcast %15 : vector<32x1xf32> to vector<32x128xf32>
    %46 = arith.addf %44, %45 : vector<32x128xf32>
    %47 = math.tanh %46 : vector<32x128xf32>
    %cst_31 = arith.constant dense<0.000000e+00> : vector<32x128xf32>
    %48 = tpu.matmul %9, %47, %cst_31 {dimension_numbers = #tpu.dot_dimension_numbers<[1], [0], [0], [1], [0, 0, 1, 1], [], []>} : vector<32x32xf32>, vector<32x128xf32>, vector<32x128xf32> -> vector<32x128xf32>
    %49 = vector.broadcast %17 : vector<32x1xf32> to vector<32x128xf32>
    %50 = arith.addf %48, %49 : vector<32x128xf32>
    %51 = math.tanh %50 : vector<32x128xf32>
    %cst_32 = arith.constant dense<0.000000e+00> : vector<32x128xf32>
    %52 = tpu.matmul %11, %51, %cst_32 {dimension_numbers = #tpu.dot_dimension_numbers<[1], [0], [0], [1], [0, 0, 1, 1], [], []>} : vector<32x32xf32>, vector<32x128xf32>, vector<32x128xf32> -> vector<32x128xf32>
    %53 = vector.broadcast %19 : vector<32x1xf32> to vector<32x128xf32>
    %54 = arith.addf %52, %53 : vector<32x128xf32>
    %55 = math.tanh %54 : vector<32x128xf32>
    %cst_33 = arith.constant dense<0.000000e+00> : vector<32x128xf32>
    %56 = tpu.matmul %13, %55, %cst_33 {dimension_numbers = #tpu.dot_dimension_numbers<[1], [0], [0], [1], [0, 0, 1, 1], [], []>} : vector<32x32xf32>, vector<32x128xf32>, vector<32x128xf32> -> vector<32x128xf32>
    %57 = vector.broadcast %21 : vector<32x1xf32> to vector<32x128xf32>
    %58 = arith.addf %56, %57 : vector<32x128xf32>
    %59 = math.tanh %58 : vector<32x128xf32>
    %cst_34 = arith.constant dense<0.000000e+00> : vector<2x128xf32>
    %60 = tpu.matmul %24, %59, %cst_34 {dimension_numbers = #tpu.dot_dimension_numbers<[1], [0], [0], [1], [0, 0, 1, 1], [], []>} : vector<2x32xf32>, vector<32x128xf32>, vector<2x128xf32> -> vector<2x128xf32>
    %61 = vector.broadcast %27 : vector<2x1xf32> to vector<2x128xf32>
    %62 = arith.addf %60, %61 : vector<2x128xf32>
    %c0_35 = arith.constant 0 : index
    %63 = arith.index_cast %29 : i32 to index
    %64 = vector.load %arg4[%c0_35, %63] : memref<2x128xf32, #tpu.memory_space<vmem>>, vector<2x128xf32>
    tpu.vector_store %arg4[%c0_35, %63], %62 {strides = array<i32>} : memref<2x128xf32, #tpu.memory_space<vmem>>, vector<2x128xf32>,
    %c1_i32 = arith.constant 1 : i32
    return
  }
  func.func @transform_0(%arg0: i32) -> (i32, i32) {
    %c0_i32 = arith.constant 0 : i32
    %c0_i32_0 = arith.constant 0 : i32
    return %c0_i32, %arg0 : i32, i32
  }
  func.func @transform_1(%arg0: i32) -> (i32, i32, i32) {
    %c0_i32 = arith.constant 0 : i32
    %c0_i32_0 = arith.constant 0 : i32
    %c0_i32_1 = arith.constant 0 : i32
    %c0_i32_2 = arith.constant 0 : i32
    return %c0_i32, %c0_i32_0, %c0_i32_1 : i32, i32, i32
  }
  func.func @transform_2(%arg0: i32) -> (i32, i32, i32) {
    %c0_i32 = arith.constant 0 : i32
    %c0_i32_0 = arith.constant 0 : i32
    %c0_i32_1 = arith.constant 0 : i32
    %c0_i32_2 = arith.constant 0 : i32
    return %c0_i32, %c0_i32_0, %c0_i32_1 : i32, i32, i32
  }
  func.func @transform_3(%arg0: i32) -> (i32, i32) {
    %c0_i32 = arith.constant 0 : i32
    %c0_i32_0 = arith.constant 0 : i32
    return %c0_i32, %arg0 : i32, i32
  }
}

</mosaic_0001>

<llo_original>
// kernel: multiclass_forward_fm.1
$region0: #{multiclass_forward_fm.1}
  #allocation0 [shape = 'u32[]', space=smem, size = 0x4, offset = 0x4, fixed_abs, tag = 'smem constant byte address 0x4 - core index']
  #allocation1 [shape = 'u32[144,128]{1,0:T(1,128)}', space=vmem, size = 0x12000, scoped, tag = 'internal scratch']
  %s0 = inlined_call_operand.vmem [shape: f32[2,128], index: 0, kind: input, shape index: {}]
  %s1 = inlined_call_operand.vmem [shape: f32[6,32,32], index: 1, kind: input, shape index: {}]
  %s2 = inlined_call_operand.vmem [shape: f32[6,32,1], index: 2, kind: input, shape index: {}]
  %s3 = inlined_call_operand.hbm [shape: f32[2,128], index: 3, kind: output, shape index: {}]
  %s4 = sld [smem:[#allocation0]]
  $region22: #{multiclass_forward_fm.1} parent=0
    _
  %s6 = ssub.s32 1, %s4
  %s7 = scalar_select 0, %s6, %s4
  $region1: #{multiclass_forward_fm.1} parent=0
    #allocation2 [shape = 'u8[1024]{0}', space=vmem, size = 0x400, scoped, tag = 'output window, operand 0, single buffered']
    #allocation3 [shape = 's32[1]{0}', space=sflag, size = 0x4, scoped, tag = 'scoped memory for multiclass_forward_fm.1']
    %8 = vsyncpa [#allocation3], 0
    // Predicated region
    $region2: #{multiclass_forward_fm.1} parent=1 // pred_check
      _
    $region3: #{multiclass_forward_fm.1} parent=1 // pred_check_branch
      %10 = sbr.rel (0) target = $region5
    $region4: #{multiclass_forward_fm.1} parent=1 // pred_region
      _
    $region5: #{multiclass_forward_fm.1} parent=1 // pred_fallthru
      _
    // Predicated region
    $region6: #{multiclass_forward_fm.1} parent=1 // pred_check
      _
    $region7: #{multiclass_forward_fm.1} parent=1 // pred_check_branch
      %12 = sbr.rel (0) target = $region9
    $region8: #{multiclass_forward_fm.1} parent=1 // pred_region
      _
    $region9: #{multiclass_forward_fm.1} parent=1 // pred_fallthru
      _
    // Predicated region
    $region10: #{multiclass_forward_fm.1} parent=1 // pred_check
      _
    $region11: #{multiclass_forward_fm.1} parent=1 // pred_check_branch
      %14 = sbr.rel (0) target = $region13
    $region12: #{multiclass_forward_fm.1} parent=1 // pred_region
      _
    $region13: #{multiclass_forward_fm.1} parent=1 // pred_fallthru
      _
    %v15 = vld [vmem:[%s1] sm:$0xff]
    %v16 = vld [vmem:[%s1 + $0x8] sm:$0xff]
    %v17 = vld [vmem:[%s1 + $0x10] sm:$0xff]
    %v18 = vld [vmem:[%s1 + $0x18] sm:$0xff]
    %v19 = vld [vmem:[%s2] sm:$0xff]
    %v20 = vld [vmem:[%s2 + $0x8] sm:$0xff]
    %v21 = vld [vmem:[%s2 + $0x10] sm:$0xff]
    %v22 = vld [vmem:[%s2 + $0x18] sm:$0xff]
    %s23 = scalar_lea.vmem %s1, 32
    %v24 = vld [vmem:[%s23] sm:$0xff]
    %v25 = vld [vmem:[%s23 + $0x8] sm:$0xff]
    %v26 = vld [vmem:[%s23 + $0x10] sm:$0xff]
    %v27 = vld [vmem:[%s23 + $0x18] sm:$0xff]
    %s28 = scalar_lea.vmem %s1, 64
    %v29 = vld [vmem:[%s28] sm:$0xff]
    %v30 = vld [vmem:[%s28 + $0x8] sm:$0xff]
    %v31 = vld [vmem:[%s28 + $0x10] sm:$0xff]
    %v32 = vld [vmem:[%s28 + $0x18] sm:$0xff]
    %s33 = scalar_lea.vmem %s1, 96
    %v34 = vld [vmem:[%s33] sm:$0xff]
    %v35 = vld [vmem:[%s33 + $0x8] sm:$0xff]
    %v36 = vld [vmem:[%s33 + $0x10] sm:$0xff]
    %v37 = vld [vmem:[%s33 + $0x18] sm:$0xff]
    %s38 = scalar_lea.vmem %s1, 128
    %v39 = vld [vmem:[%s38] sm:$0xff]
    %v40 = vld [vmem:[%s38 + $0x8] sm:$0xff]
    %v41 = vld [vmem:[%s38 + $0x10] sm:$0xff]
    %v42 = vld [vmem:[%s38 + $0x18] sm:$0xff]
    %s43 = scalar_lea.vmem %s2, 32
    %v44 = vld [vmem:[%s43] sm:$0xff]
    %v45 = vld [vmem:[%s43 + $0x8] sm:$0xff]
    %v46 = vld [vmem:[%s43 + $0x10] sm:$0xff]
    %v47 = vld [vmem:[%s43 + $0x18] sm:$0xff]
    %s48 = scalar_lea.vmem %s2, 64
    %v49 = vld [vmem:[%s48] sm:$0xff]
    %v50 = vld [vmem:[%s48 + $0x8] sm:$0xff]
    %v51 = vld [vmem:[%s48 + $0x10] sm:$0xff]
    %v52 = vld [vmem:[%s48 + $0x18] sm:$0xff]
    %s53 = scalar_lea.vmem %s2, 96
    %v54 = vld [vmem:[%s53] sm:$0xff]
    %v55 = vld [vmem:[%s53 + $0x8] sm:$0xff]
    %v56 = vld [vmem:[%s53 + $0x10] sm:$0xff]
    %v57 = vld [vmem:[%s53 + $0x18] sm:$0xff]
    %s58 = scalar_lea.vmem %s2, 128
    %v59 = vld [vmem:[%s58] sm:$0xff]
    %v60 = vld [vmem:[%s58 + $0x8] sm:$0xff]
    %v61 = vld [vmem:[%s58 + $0x10] sm:$0xff]
    %v62 = vld [vmem:[%s58 + $0x18] sm:$0xff]
    %s63 = scalar_lea.vmem %s1, 160
    %v64 = vld [vmem:[%s63] sm:$0xff]
    %s65 = scalar_lea.vmem %s2, 160
    %v66 = vld [vmem:[%s65] sm:$0xff]
    %v67 = vld [vmem:[%s0] sm:$0x3]
    %69 = vset.pattern.permute.xlu0 0
    %70 = vperm.xlu0 %69, %v15
    %v71 = vpop.permute.xlu0 %70
    %74 = vset.pattern.permute.xlu0 0
    %75 = vperm.xlu0 %74, %v16
    %v76 = vpop.permute.xlu0 %75
    %79 = vset.pattern.permute.xlu0 0
    %80 = vperm.xlu0 %79, %v17
    %v81 = vpop.permute.xlu0 %80
    %84 = vset.pattern.permute.xlu0 0
    %85 = vperm.xlu0 %84, %v18
    %v86 = vpop.permute.xlu0 %85
    %v88 = vlaneseq
    %v89 = vshrl.u32 %v88, 7
    %v90 = vsub.s32 0, %v89
    %v91 = vrot.slane %v67, %v90
    %v92 = vmul.f32 %v71, %v91
    %v93 = vmul.f32 %v76, %v91
    %v94 = vmul.f32 %v81, %v91
    %v95 = vmul.f32 %v86, %v91
    %96 = vset.pattern.permute.xlu0 1
    %97 = vperm.xlu0 %96, %v15
    %v98 = vpop.permute.xlu0 %97
    %100 = vset.pattern.permute.xlu0 1
    %101 = vperm.xlu0 %100, %v16
    %v102 = vpop.permute.xlu0 %101
    %104 = vset.pattern.permute.xlu0 1
    %105 = vperm.xlu0 %104, %v17
    %v106 = vpop.permute.xlu0 %105
    %108 = vset.pattern.permute.xlu0 1
    %109 = vperm.xlu0 %108, %v18
    %v110 = vpop.permute.xlu0 %109
    %v112 = vlaneseq
    %v113 = vshrl.u32 %v112, 7
    %v114 = vsub.s32 1, %v113
    %v115 = vrot.slane %v67, %v114
    %v116 = vmul.f32 %v98, %v115
    %v117 = vmul.f32 %v102, %v115
    %v118 = vmul.f32 %v106, %v115
    %v119 = vmul.f32 %v110, %v115
    %v120 = vadd.f32 %v92, %v116
    %v121 = vadd.f32 %v93, %v117
    %v122 = vadd.f32 %v94, %v118
    %v123 = vadd.f32 %v95, %v119
    %125 = vset.pattern.permute.xlu0 0
    %126 = vperm.xlu0 %125, %v19
    %v127 = vpop.permute.xlu0 %126
    %130 = vset.pattern.permute.xlu0 0
    %131 = vperm.xlu0 %130, %v20
    %v132 = vpop.permute.xlu0 %131
    %135 = vset.pattern.permute.xlu0 0
    %136 = vperm.xlu0 %135, %v21
    %v137 = vpop.permute.xlu0 %136
    %140 = vset.pattern.permute.xlu0 0
    %141 = vperm.xlu0 %140, %v22
    %v142 = vpop.permute.xlu0 %141
    %v144 = vadd.f32 %v120, %v127
    %v145 = vadd.f32 %v121, %v132
    %v146 = vadd.f32 %v122, %v137
    %v147 = vadd.f32 %v123, %v142
    %v148 = vtanh.pop %v144
    %v149 = vtanh.pop %v145
    %v150 = vtanh.pop %v146
    %v151 = vtanh.pop %v147
    %153 = vset.pattern.permute.xlu0 0
    %154 = vperm.xlu0 %153, %v44
    %v155 = vpop.permute.xlu0 %154
    %158 = vset.pattern.permute.xlu0 0
    %159 = vperm.xlu0 %158, %v45
    %v160 = vpop.permute.xlu0 %159
    %163 = vset.pattern.permute.xlu0 0
    %164 = vperm.xlu0 %163, %v46
    %v165 = vpop.permute.xlu0 %164
    %168 = vset.pattern.permute.xlu0 0
    %169 = vperm.xlu0 %168, %v47
    %v170 = vpop.permute.xlu0 %169
    %vm172 = vcmask 261120
    %v174 = vsel %vm172, %v24, 0
    %v177 = vsel %vm172, %v25, 0
    %v180 = vsel %vm172, %v26, 0
    %v183 = vsel %vm172, %v27, 0
    %185 = vmatprep.subr.mxu0 0.0
    %186 = vmatpush1.msra.mxu0 %v148
    %187 = vmatprep.subr.mxu0 0.0
    %188 = vmatpush1.msra.mxu0 %v149
    %189 = vmatprep.subr.mxu0 0.0
    %190 = vmatpush1.msra.mxu0 %v150
    %191 = vmatprep.subr.mxu0 0.0
    %192 = vmatpush1.msra.mxu0 %v151
    %193 = vmatprep.subr.mxu0 0.0
    %194 = vmatpush1.msra.mxu0 0.0
    %195 = vmatprep.subr.mxu0 0.0
    %196 = vmatpush1.msra.mxu0 0.0
    %197 = vmatprep.subr.mxu0 0.0
    %198 = vmatpush1.msra.mxu0 0.0
    %199 = vmatprep.subr.mxu0 0.0
    %200 = vmatpush1.msra.mxu0 0.0
    %201 = vmatprep.subr.mxu0 0.0
    %202 = vmatpush1.msra.mxu0 0.0
    %203 = vmatprep.subr.mxu0 0.0
    %204 = vmatpush1.msra.mxu0 0.0
    %205 = vmatprep.subr.mxu0 0.0
    %206 = vmatpush1.msra.mxu0 0.0
    %207 = vmatprep.subr.mxu0 0.0
    %208 = vmatpush1.msra.mxu0 0.0
    %209 = vmatprep.subr.mxu0 0.0
    %210 = vmatpush1.msra.mxu0 0.0
    %211 = vmatprep.subr.mxu0 0.0
    %212 = vmatpush1.msra.mxu0 0.0
    %213 = vmatprep.subr.mxu0 0.0
    %214 = vmatpush1.msra.mxu0 0.0
    %215 = vmatprep.subr.mxu0 0.0
    %216 = vmatpush1.msra.mxu0 0.0
    %217 = vmatprep.subr.mxu0 0.0
    %218 = vmatpush1.msra.mxu0 0.0
    %219 = vmatprep.subr.mxu0 0.0
    %220 = vmatpush1.msra.mxu0 0.0
    %221 = vmatprep.subr.mxu0 0.0
    %222 = vmatpush1.msra.mxu0 0.0
    %223 = vmatprep.subr.mxu0 0.0
    %224 = vmatpush1.msra.mxu0 0.0
    %225 = vmatprep.subr.mxu0 0.0
    %226 = vmatpush1.msra.mxu0 0.0
    %227 = vmatprep.subr.mxu0 0.0
    %228 = vmatpush1.msra.mxu0 0.0
    %229 = vmatprep.subr.mxu0 0.0
    %230 = vmatpush1.msra.mxu0 0.0
    %231 = vmatprep.subr.mxu0 0.0
    %232 = vmatpush1.msra.mxu0 0.0
    %233 = vmatprep.subr.mxu0 0.0
    %234 = vmatpush1.msra.mxu0 0.0
    %235 = vmatprep.subr.mxu0 0.0
    %236 = vmatpush1.msra.mxu0 0.0
    %237 = vmatprep.subr.mxu0 0.0
    %238 = vmatpush1.msra.mxu0 0.0
    %239 = vmatprep.subr.mxu0 0.0
    %240 = vmatpush1.msra.mxu0 0.0
    %241 = vmatprep.subr.mxu0 0.0
    %242 = vmatpush1.msra.mxu0 0.0
    %243 = vmatprep.subr.mxu0 0.0
    %244 = vmatpush1.msra.mxu0 0.0
    %245 = vmatprep.subr.mxu0 0.0
    %246 = vmatpush1.msra.mxu0 0.0
    %247 = vmatprep.subr.mxu0 0.0
    %248 = vmatpush1.msra.mxu0 0.0
    %249 = vmatprep.mubr.f32.mxu0 0.0
    %250 = vmatmul.mubr.f32.gmra.mrb[0].mxu0 %v174
    %v251 = vpop.f32.mrb[0].mxu0
    %v252 = vadd.f32 %v155, %v251
    %v253 = vpop.f32.mrb[0].mxu0
    %254 = vmatprep.mubr.f32.mxu0 0.0
    %255 = vmatmul.mubr.f32.gmra.mrb[0].mxu0 %v177
    %v256 = vpop.f32.mrb[0].mxu0
    %v257 = vadd.f32 %v160, %v256
    %v258 = vpop.f32.mrb[0].mxu0
    %259 = vmatprep.mubr.f32.mxu0 0.0
    %260 = vmatmul.mubr.f32.gmra.mrb[0].mxu0 %v180
    %v261 = vpop.f32.mrb[0].mxu0
    %v262 = vadd.f32 %v165, %v261
    %v263 = vpop.f32.mrb[0].mxu0
    %264 = vmatprep.mubr.f32.mxu0 0.0
    %265 = vmatmul.mubr.f32.gmra.mrb[0].mxu0 %v183
    %v266 = vpop.f32.mrb[0].mxu0
    %v267 = vadd.f32 %v170, %v266
    %v268 = vpop.f32.mrb[0].mxu0
    %269 = vdwg.mxu0
    %v270 = vtanh.pop %v252
    %v271 = vtanh.pop %v257
    %v272 = vtanh.pop %v262
    %v273 = vtanh.pop %v267
    %275 = vset.pattern.permute.xlu0 0
    %276 = vperm.xlu0 %275, %v49
    %v277 = vpop.permute.xlu0 %276
    %280 = vset.pattern.permute.xlu0 0
    %281 = vperm.xlu0 %280, %v50
    %v282 = vpop.permute.xlu0 %281
    %285 = vset.pattern.permute.xlu0 0
    %286 = vperm.xlu0 %285, %v51
    %v287 = vpop.permute.xlu0 %286
    %290 = vset.pattern.permute.xlu0 0
    %291 = vperm.xlu0 %290, %v52
    %v292 = vpop.permute.xlu0 %291
    %v295 = vsel %vm172, %v29, 0
    %v298 = vsel %vm172, %v30, 0
    %v301 = vsel %vm172, %v31, 0
    %v304 = vsel %vm172, %v32, 0
    %306 = vmatprep.subr.mxu0 0.0
    %307 = vmatpush1.msra.mxu0 %v270
    %308 = vmatprep.subr.mxu0 0.0
    %309 = vmatpush1.msra.mxu0 %v271
    %310 = vmatprep.subr.mxu0 0.0
    %311 = vmatpush1.msra.mxu0 %v272
    %312 = vmatprep.subr.mxu0 0.0
    %313 = vmatpush1.msra.mxu0 %v273
    %314 = vmatprep.subr.mxu0 0.0
    %315 = vmatpush1.msra.mxu0 0.0
    %316 = vmatprep.subr.mxu0 0.0
    %317 = vmatpush1.msra.mxu0 0.0
    %318 = vmatprep.subr.mxu0 0.0
    %319 = vmatpush1.msra.mxu0 0.0
    %320 = vmatprep.subr.mxu0 0.0
    %321 = vmatpush1.msra.mxu0 0.0
    %322 = vmatprep.subr.mxu0 0.0
    %323 = vmatpush1.msra.mxu0 0.0
    %324 = vmatprep.subr.mxu0 0.0
    %325 = vmatpush1.msra.mxu0 0.0
    %326 = vmatprep.subr.mxu0 0.0
    %327 = vmatpush1.msra.mxu0 0.0
    %328 = vmatprep.subr.mxu0 0.0
    %329 = vmatpush1.msra.mxu0 0.0
    %330 = vmatprep.subr.mxu0 0.0
    %331 = vmatpush1.msra.mxu0 0.0
    %332 = vmatprep.subr.mxu0 0.0
    %333 = vmatpush1.msra.mxu0 0.0
    %334 = vmatprep.subr.mxu0 0.0
    %335 = vmatpush1.msra.mxu0 0.0
    %336 = vmatprep.subr.mxu0 0.0
    %337 = vmatpush1.msra.mxu0 0.0
    %338 = vmatprep.subr.mxu0 0.0
    %339 = vmatpush1.msra.mxu0 0.0
    %340 = vmatprep.subr.mxu0 0.0
    %341 = vmatpush1.msra.mxu0 0.0
    %342 = vmatprep.subr.mxu0 0.0
    %343 = vmatpush1.msra.mxu0 0.0
    %344 = vmatprep.subr.mxu0 0.0
    %345 = vmatpush1.msra.mxu0 0.0
    %346 = vmatprep.subr.mxu0 0.0
    %347 = vmatpush1.msra.mxu0 0.0
    %348 = vmatprep.subr.mxu0 0.0
    %349 = vmatpush1.msra.mxu0 0.0
    %350 = vmatprep.subr.mxu0 0.0
    %351 = vmatpush1.msra.mxu0 0.0
    %352 = vmatprep.subr.mxu0 0.0
    %353 = vmatpush1.msra.mxu0 0.0
    %354 = vmatprep.subr.mxu0 0.0
    %355 = vmatpush1.msra.mxu0 0.0
    %356 = vmatprep.subr.mxu0 0.0
    %357 = vmatpush1.msra.mxu0 0.0
    %358 = vmatprep.subr.mxu0 0.0
    %359 = vmatpush1.msra.mxu0 0.0
    %360 = vmatprep.subr.mxu0 0.0
    %361 = vmatpush1.msra.mxu0 0.0
    %362 = vmatprep.subr.mxu0 0.0
    %363 = vmatpush1.msra.mxu0 0.0
    %364 = vmatprep.subr.mxu0 0.0
    %365 = vmatpush1.msra.mxu0 0.0
    %366 = vmatprep.subr.mxu0 0.0
    %367 = vmatpush1.msra.mxu0 0.0
    %368 = vmatprep.subr.mxu0 0.0
    %369 = vmatpush1.msra.mxu0 0.0
    %370 = vmatprep.mubr.f32.mxu0 0.0
    %371 = vmatmul.mubr.f32.gmra.mrb[0].mxu0 %v295
    %v372 = vpop.f32.mrb[0].mxu0
    %v373 = vadd.f32 %v277, %v372
    %v374 = vpop.f32.mrb[0].mxu0
    %375 = vmatprep.mubr.f32.mxu0 0.0
    %376 = vmatmul.mubr.f32.gmra.mrb[0].mxu0 %v298
    %v377 = vpop.f32.mrb[0].mxu0
    %v378 = vadd.f32 %v282, %v377
    %v379 = vpop.f32.mrb[0].mxu0
    %380 = vmatprep.mubr.f32.mxu0 0.0
    %381 = vmatmul.mubr.f32.gmra.mrb[0].mxu0 %v301
    %v382 = vpop.f32.mrb[0].mxu0
    %v383 = vadd.f32 %v287, %v382
    %v384 = vpop.f32.mrb[0].mxu0
    %385 = vmatprep.mubr.f32.mxu0 0.0
    %386 = vmatmul.mubr.f32.gmra.mrb[0].mxu0 %v304
    %v387 = vpop.f32.mrb[0].mxu0
    %v388 = vadd.f32 %v292, %v387
    %v389 = vpop.f32.mrb[0].mxu0
    %390 = vdwg.mxu0
    %v391 = vtanh.pop %v373
    %v392 = vtanh.pop %v378
    %v393 = vtanh.pop %v383
    %v394 = vtanh.pop %v388
    %396 = vset.pattern.permute.xlu0 0
    %397 = vperm.xlu0 %396, %v54
    %v398 = vpop.permute.xlu0 %397
    %401 = vset.pattern.permute.xlu0 0
    %402 = vperm.xlu0 %401, %v55
    %v403 = vpop.permute.xlu0 %402
    %406 = vset.pattern.permute.xlu0 0
    %407 = vperm.xlu0 %406, %v56
    %v408 = vpop.permute.xlu0 %407
    %411 = vset.pattern.permute.xlu0 0
    %412 = vperm.xlu0 %411, %v57
    %v413 = vpop.permute.xlu0 %412
    %v416 = vsel %vm172, %v34, 0
    %v419 = vsel %vm172, %v35, 0
    %v422 = vsel %vm172, %v36, 0
    %v425 = vsel %vm172, %v37, 0
    %427 = vmatprep.subr.mxu0 0.0
    %428 = vmatpush1.msra.mxu0 %v391
    %429 = vmatprep.subr.mxu0 0.0
    %430 = vmatpush1.msra.mxu0 %v392
    %431 = vmatprep.subr.mxu0 0.0
    %432 = vmatpush1.msra.mxu0 %v393
    %433 = vmatprep.subr.mxu0 0.0
    %434 = vmatpush1.msra.mxu0 %v394
    %435 = vmatprep.subr.mxu0 0.0
    %436 = vmatpush1.msra.mxu0 0.0
    %437 = vmatprep.subr.mxu0 0.0
    %438 = vmatpush1.msra.mxu0 0.0
    %439 = vmatprep.subr.mxu0 0.0
    %440 = vmatpush1.msra.mxu0 0.0
    %441 = vmatprep.subr.mxu0 0.0
    %442 = vmatpush1.msra.mxu0 0.0
    %443 = vmatprep.subr.mxu0 0.0
    %444 = vmatpush1.msra.mxu0 0.0
    %445 = vmatprep.subr.mxu0 0.0
    %446 = vmatpush1.msra.mxu0 0.0
    %447 = vmatprep.subr.mxu0 0.0
    %448 = vmatpush1.msra.mxu0 0.0
    %449 = vmatprep.subr.mxu0 0.0
    %450 = vmatpush1.msra.mxu0 0.0
    %451 = vmatprep.subr.mxu0 0.0
    %452 = vmatpush1.msra.mxu0 0.0
    %453 = vmatprep.subr.mxu0 0.0
    %454 = vmatpush1.msra.mxu0 0.0
    %455 = vmatprep.subr.mxu0 0.0
    %456 = vmatpush1.msra.mxu0 0.0
    %457 = vmatprep.subr.mxu0 0.0
    %458 = vmatpush1.msra.mxu0 0.0
    %459 = vmatprep.subr.mxu0 0.0
    %460 = vmatpush1.msra.mxu0 0.0
    %461 = vmatprep.subr.mxu0 0.0
    %462 = vmatpush1.msra.mxu0 0.0
    %463 = vmatprep.subr.mxu0 0.0
    %464 = vmatpush1.msra.mxu0 0.0
    %465 = vmatprep.subr.mxu0 0.0
    %466 = vmatpush1.msra.mxu0 0.0
    %467 = vmatprep.subr.mxu0 0.0
    %468 = vmatpush1.msra.mxu0 0.0
    %469 = vmatprep.subr.mxu0 0.0
    %470 = vmatpush1.msra.mxu0 0.0
    %471 = vmatprep.subr.mxu0 0.0
    %472 = vmatpush1.msra.mxu0 0.0
    %473 = vmatprep.subr.mxu0 0.0
    %474 = vmatpush1.msra.mxu0 0.0
    %475 = vmatprep.subr.mxu0 0.0
    %476 = vmatpush1.msra.mxu0 0.0
    %477 = vmatprep.subr.mxu0 0.0
    %478 = vmatpush1.msra.mxu0 0.0
    %479 = vmatprep.subr.mxu0 0.0
    %480 = vmatpush1.msra.mxu0 0.0
    %481 = vmatprep.subr.mxu0 0.0
    %482 = vmatpush1.msra.mxu0 0.0
    %483 = vmatprep.subr.mxu0 0.0
    %484 = vmatpush1.msra.mxu0 0.0
    %485 = vmatprep.subr.mxu0 0.0
    %486 = vmatpush1.msra.mxu0 0.0
    %487 = vmatprep.subr.mxu0 0.0
    %488 = vmatpush1.msra.mxu0 0.0
    %489 = vmatprep.subr.mxu0 0.0
    %490 = vmatpush1.msra.mxu0 0.0
    %491 = vmatprep.mubr.f32.mxu0 0.0
    %492 = vmatmul.mubr.f32.gmra.mrb[0].mxu0 %v416
    %v493 = vpop.f32.mrb[0].mxu0
    %v494 = vadd.f32 %v398, %v493
    %v495 = vpop.f32.mrb[0].mxu0
    %496 = vmatprep.mubr.f32.mxu0 0.0
    %497 = vmatmul.mubr.f32.gmra.mrb[0].mxu0 %v419
    %v498 = vpop.f32.mrb[0].mxu0
    %v499 = vadd.f32 %v403, %v498
    %v500 = vpop.f32.mrb[0].mxu0
    %501 = vmatprep.mubr.f32.mxu0 0.0
    %502 = vmatmul.mubr.f32.gmra.mrb[0].mxu0 %v422
    %v503 = vpop.f32.mrb[0].mxu0
    %v504 = vadd.f32 %v408, %v503
    %v505 = vpop.f32.mrb[0].mxu0
    %506 = vmatprep.mubr.f32.mxu0 0.0
    %507 = vmatmul.mubr.f32.gmra.mrb[0].mxu0 %v425
    %v508 = vpop.f32.mrb[0].mxu0
    %v509 = vadd.f32 %v413, %v508
    %v510 = vpop.f32.mrb[0].mxu0
    %511 = vdwg.mxu0
    %v512 = vtanh.pop %v494
    %v513 = vtanh.pop %v499
    %v514 = vtanh.pop %v504
    %v515 = vtanh.pop %v509
    %517 = vset.pattern.permute.xlu0 0
    %518 = vperm.xlu0 %517, %v59
    %v519 = vpop.permute.xlu0 %518
    %522 = vset.pattern.permute.xlu0 0
    %523 = vperm.xlu0 %522, %v60
    %v524 = vpop.permute.xlu0 %523
    %527 = vset.pattern.permute.xlu0 0
    %528 = vperm.xlu0 %527, %v61
    %v529 = vpop.permute.xlu0 %528
    %532 = vset.pattern.permute.xlu0 0
    %533 = vperm.xlu0 %532, %v62
    %v534 = vpop.permute.xlu0 %533
    %v537 = vsel %vm172, %v39, 0
    %v540 = vsel %vm172, %v40, 0
    %v543 = vsel %vm172, %v41, 0
    %v546 = vsel %vm172, %v42, 0
    %548 = vmatprep.subr.mxu0 0.0
    %549 = vmatpush1.msra.mxu0 %v512
    %550 = vmatprep.subr.mxu0 0.0
    %551 = vmatpush1.msra.mxu0 %v513
    %552 = vmatprep.subr.mxu0 0.0
    %553 = vmatpush1.msra.mxu0 %v514
    %554 = vmatprep.subr.mxu0 0.0
    %555 = vmatpush1.msra.mxu0 %v515
    %556 = vmatprep.subr.mxu0 0.0
    %557 = vmatpush1.msra.mxu0 0.0
    %558 = vmatprep.subr.mxu0 0.0
    %559 = vmatpush1.msra.mxu0 0.0
    %560 = vmatprep.subr.mxu0 0.0
    %561 = vmatpush1.msra.mxu0 0.0
    %562 = vmatprep.subr.mxu0 0.0
    %563 = vmatpush1.msra.mxu0 0.0
    %564 = vmatprep.subr.mxu0 0.0
    %565 = vmatpush1.msra.mxu0 0.0
    %566 = vmatprep.subr.mxu0 0.0
    %567 = vmatpush1.msra.mxu0 0.0
    %568 = vmatprep.subr.mxu0 0.0
    %569 = vmatpush1.msra.mxu0 0.0
    %570 = vmatprep.subr.mxu0 0.0
    %571 = vmatpush1.msra.mxu0 0.0
    %572 = vmatprep.subr.mxu0 0.0
    %573 = vmatpush1.msra.mxu0 0.0
    %574 = vmatprep.subr.mxu0 0.0
    %575 = vmatpush1.msra.mxu0 0.0
    %576 = vmatprep.subr.mxu0 0.0
    %577 = vmatpush1.msra.mxu0 0.0
    %578 = vmatprep.subr.mxu0 0.0
    %579 = vmatpush1.msra.mxu0 0.0
    %580 = vmatprep.subr.mxu0 0.0
    %581 = vmatpush1.msra.mxu0 0.0
    %582 = vmatprep.subr.mxu0 0.0
    %583 = vmatpush1.msra.mxu0 0.0
    %584 = vmatprep.subr.mxu0 0.0
    %585 = vmatpush1.msra.mxu0 0.0
    %586 = vmatprep.subr.mxu0 0.0
    %587 = vmatpush1.msra.mxu0 0.0
    %588 = vmatprep.subr.mxu0 0.0
    %589 = vmatpush1.msra.mxu0 0.0
    %590 = vmatprep.subr.mxu0 0.0
    %591 = vmatpush1.msra.mxu0 0.0
    %592 = vmatprep.subr.mxu0 0.0
    %593 = vmatpush1.msra.mxu0 0.0
    %594 = vmatprep.subr.mxu0 0.0
    %595 = vmatpush1.msra.mxu0 0.0
    %596 = vmatprep.subr.mxu0 0.0
    %597 = vmatpush1.msra.mxu0 0.0
    %598 = vmatprep.subr.mxu0 0.0
    %599 = vmatpush1.msra.mxu0 0.0
    %600 = vmatprep.subr.mxu0 0.0
    %601 = vmatpush1.msra.mxu0 0.0
    %602 = vmatprep.subr.mxu0 0.0
    %603 = vmatpush1.msra.mxu0 0.0
    %604 = vmatprep.subr.mxu0 0.0
    %605 = vmatpush1.msra.mxu0 0.0
    %606 = vmatprep.subr.mxu0 0.0
    %607 = vmatpush1.msra.mxu0 0.0
    %608 = vmatprep.subr.mxu0 0.0
    %609 = vmatpush1.msra.mxu0 0.0
    %610 = vmatprep.subr.mxu0 0.0
    %611 = vmatpush1.msra.mxu0 0.0
    %612 = vmatprep.mubr.f32.mxu0 0.0
    %613 = vmatmul.mubr.f32.gmra.mrb[0].mxu0 %v537
    %v614 = vpop.f32.mrb[0].mxu0
    %v615 = vadd.f32 %v519, %v614
    %v616 = vpop.f32.mrb[0].mxu0
    %617 = vmatprep.mubr.f32.mxu0 0.0
    %618 = vmatmul.mubr.f32.gmra.mrb[0].mxu0 %v540
    %v619 = vpop.f32.mrb[0].mxu0
    %v620 = vadd.f32 %v524, %v619
    %v621 = vpop.f32.mrb[0].mxu0
    %622 = vmatprep.mubr.f32.mxu0 0.0
    %623 = vmatmul.mubr.f32.gmra.mrb[0].mxu0 %v543
    %v624 = vpop.f32.mrb[0].mxu0
    %v625 = vadd.f32 %v529, %v624
    %v626 = vpop.f32.mrb[0].mxu0
    %627 = vmatprep.mubr.f32.mxu0 0.0
    %628 = vmatmul.mubr.f32.gmra.mrb[0].mxu0 %v546
    %v629 = vpop.f32.mrb[0].mxu0
    %v630 = vadd.f32 %v534, %v629
    %v631 = vpop.f32.mrb[0].mxu0
    %632 = vdwg.mxu0
    %v633 = vtanh.pop %v615
    %v634 = vtanh.pop %v620
    %v635 = vtanh.pop %v625
    %v636 = vtanh.pop %v630
    %638 = vset.pattern.permute.xlu0 0
    %639 = vperm.xlu0 %638, %v66
    %v640 = vpop.permute.xlu0 %639
    %v643 = vsel %vm172, %v64, 0
    %645 = vmatprep.subr.mxu0 0.0
    %646 = vmatpush1.msra.mxu0 %v633
    %647 = vmatprep.subr.mxu0 0.0
    %648 = vmatpush1.msra.mxu0 %v634
    %649 = vmatprep.subr.mxu0 0.0
    %650 = vmatpush1.msra.mxu0 %v635
    %651 = vmatprep.subr.mxu0 0.0
    %652 = vmatpush1.msra.mxu0 %v636
    %653 = vmatprep.subr.mxu0 0.0
    %654 = vmatpush1.msra.mxu0 0.0
    %655 = vmatprep.subr.mxu0 0.0
    %656 = vmatpush1.msra.mxu0 0.0
    %657 = vmatprep.subr.mxu0 0.0
    %658 = vmatpush1.msra.mxu0 0.0
    %659 = vmatprep.subr.mxu0 0.0
    %660 = vmatpush1.msra.mxu0 0.0
    %661 = vmatprep.subr.mxu0 0.0
    %662 = vmatpush1.msra.mxu0 0.0
    %663 = vmatprep.subr.mxu0 0.0
    %664 = vmatpush1.msra.mxu0 0.0
    %665 = vmatprep.subr.mxu0 0.0
    %666 = vmatpush1.msra.mxu0 0.0
    %667 = vmatprep.subr.mxu0 0.0
    %668 = vmatpush1.msra.mxu0 0.0
    %669 = vmatprep.subr.mxu0 0.0
    %670 = vmatpush1.msra.mxu0 0.0
    %671 = vmatprep.subr.mxu0 0.0
    %672 = vmatpush1.msra.mxu0 0.0
    %673 = vmatprep.subr.mxu0 0.0
    %674 = vmatpush1.msra.mxu0 0.0
    %675 = vmatprep.subr.mxu0 0.0
    %676 = vmatpush1.msra.mxu0 0.0
    %677 = vmatprep.subr.mxu0 0.0
    %678 = vmatpush1.msra.mxu0 0.0
    %679 = vmatprep.subr.mxu0 0.0
    %680 = vmatpush1.msra.mxu0 0.0
    %681 = vmatprep.subr.mxu0 0.0
    %682 = vmatpush1.msra.mxu0 0.0
    %683 = vmatprep.subr.mxu0 0.0
    %684 = vmatpush1.msra.mxu0 0.0
    %685 = vmatprep.subr.mxu0 0.0
    %686 = vmatpush1.msra.mxu0 0.0
    %687 = vmatprep.subr.mxu0 0.0
    %688 = vmatpush1.msra.mxu0 0.0
    %689 = vmatprep.subr.mxu0 0.0
    %690 = vmatpush1.msra.mxu0 0.0
    %691 = vmatprep.subr.mxu0 0.0
    %692 = vmatpush1.msra.mxu0 0.0
    %693 = vmatprep.subr.mxu0 0.0
    %694 = vmatpush1.msra.mxu0 0.0
    %695 = vmatprep.subr.mxu0 0.0
    %696 = vmatpush1.msra.mxu0 0.0
    %697 = vmatprep.subr.mxu0 0.0
    %698 = vmatpush1.msra.mxu0 0.0
    %699 = vmatprep.subr.mxu0 0.0
    %700 = vmatpush1.msra.mxu0 0.0
    %701 = vmatprep.subr.mxu0 0.0
    %702 = vmatpush1.msra.mxu0 0.0
    %703 = vmatprep.subr.mxu0 0.0
    %704 = vmatpush1.msra.mxu0 0.0
    %705 = vmatprep.subr.mxu0 0.0
    %706 = vmatpush1.msra.mxu0 0.0
    %707 = vmatprep.subr.mxu0 0.0
    %708 = vmatpush1.msra.mxu0 0.0
    %709 = vmatprep.mubr.f32.mxu0 0.0
    %710 = vmatmul.mubr.f32.gmra.mrb[0].mxu0 %v643
    %v711 = vpop.f32.mrb[0].mxu0
    %v712 = vadd.f32 %v640, %v711
    %v713 = vpop.f32.mrb[0].mxu0
    %714 = vdwg.mxu0
    %715 = vst [vmem:[#allocation2] sm:$0x3] %v712
    // Predicated region
    $region14: #{multiclass_forward_fm.1} parent=1 // pred_check
      _
    $region15: #{multiclass_forward_fm.1} parent=1 // pred_check_branch
      %717 = sbr.rel (0) target = $region17
    $region16: #{multiclass_forward_fm.1} parent=1 // pred_region
      %s719 = ssub.s32 32, 32
      %720 = vsyncadd [#allocation3], %s719
      %s722 = sshll.u32 [#allocation2], 4
      %s723 = int_to_ptr.vmem [resolvable:$true] %s722
      %725 = dma.vmem_to_hbm [thread:$0]  %s723, 32, %s3, [#allocation3]
    $region17: #{multiclass_forward_fm.1} parent=1 // pred_fallthru
      _
    // Predicated region
    $region18: #{multiclass_forward_fm.1} parent=1 // pred_check
      _
    $region19: #{multiclass_forward_fm.1} parent=1 // pred_check_branch
      %727 = sbr.rel (0) target = $region21
    $region20: #{multiclass_forward_fm.1} parent=1 // pred_region
      %728 = dma.done [#allocation3], 32
    $region21: #{multiclass_forward_fm.1} parent=1 // pred_fallthru
      _
    %729 = vsyncpa [#allocation3], 1

</llo_original>
